<compile_context>
chip_gen: v6e
topology: v6e:2x2x1
jax: 0.10.0
libtpu: 0.0.40
codegen_flags: <defaults>
</compile_context>

<pallas_src>
import functools

import jax
import jax.numpy as jnp
from jax.experimental import pallas as pl
from jax.experimental.pallas import tpu as pltpu

BN_EPS = 1e-5
_VMEM_LIMIT = 32 * 1024 * 1024  # conservative: fits v7x (64 MiB) and v5e/v6e


def _pool_sum_kernel(x_ref, sum_ref, *, hw_total, hw_blk):
    """Accumulate f32 spatial sums of x into sum_ref (the (N, c_blk) output block)."""
    hi = pl.program_id(1)

    @pl.when(hi == 0)
    def _():
        sum_ref[...] = jnp.zeros_like(sum_ref)

    tile = x_ref[...]                                        # (N, c_blk, hw_blk)
    if hw_total % hw_blk != 0:
        # Mask the ragged last spatial tile (OOB block contents are undefined).
        col = jax.lax.broadcasted_iota(jnp.int32, tile.shape, tile.ndim - 1)
        in_bounds = (hi * hw_blk + col) < hw_total
        tile = jnp.where(in_bounds, tile, jnp.zeros_like(tile))

    sum_ref[...] += jnp.sum(tile, axis=-1, dtype=jnp.float32)  # (N, c_blk)


def _broadcast_kernel(sum_ref, w_ref, bias_ref, o_ref):
    """relu(pooled_sums @ W_folded + bias) broadcast over one spatial output tile.

    sum_ref : (N, Cin)  f32 global spatial sums
    w_ref   : (Cin, Cout) f32, conv weight folded with BN scale and 1/(H*W)
    bias_ref: (1, Cout) f32, folded BN bias
    o_ref   : (N, Cout, hw_blk)
    """
    y = jnp.dot(sum_ref[...], w_ref[...], preferred_element_type=jnp.float32)
    act = jnp.maximum(y + bias_ref[...], 0.0).astype(o_ref.dtype)   # (N, Cout)
    o_ref[...] = jnp.broadcast_to(act[:, :, None], o_ref.shape)


def _pick_cin_block(cin, target=256):
    if cin <= target or cin % target != 0:
        return cin            # full dim (always legal for BlockSpec)
    return target             # multiple of 8, divides cin


def aspp_pooling(x, conv_w, gamma, beta, running_mean, running_var,
                 *, hw_blk_target=512):
    """x: (N, Cin, H, W), conv_w: (Cout, Cin, 1, 1). Returns (N, Cout, H, W)."""
    N, Cin, H, W = x.shape
    Cout = conv_w.shape[0]
    HW = H * W

    # ---- Fold BN (inference) and the 1/(H*W) divisor into weight + bias ----
    scale = gamma.astype(jnp.float32) * jax.lax.rsqrt(
        running_var.astype(jnp.float32) + BN_EPS)                       # (Cout,)
    w2d = conv_w.reshape(Cout, Cin).astype(jnp.float32)
    w_folded = (w2d * scale[:, None] / HW).T                            # (Cin, Cout)
    bias = (beta.astype(jnp.float32)
            - running_mean.astype(jnp.float32) * scale).reshape(1, Cout)

    # Lane-dense spatial layout (free reshape of contiguous NCHW).
    x3 = x.reshape(N, Cin, HW)

    hw_blk = hw_blk_target if HW > hw_blk_target else HW   # mult of 128 or full dim
    c_blk = _pick_cin_block(Cin)
    n_hw = pl.cdiv(HW, hw_blk)
    n_ci = Cin // c_blk
    itemsize = jnp.dtype(x.dtype).itemsize

    # ---- Phase 1: tiled global spatial sum -> (N, Cin) f32 ----
    pooled_sums = pl.pallas_call(
        functools.partial(_pool_sum_kernel, hw_total=HW, hw_blk=hw_blk),
        out_shape=jax.ShapeDtypeStruct((N, Cin), jnp.float32),
        grid=(n_ci, n_hw),
        in_specs=[pl.BlockSpec((N, c_blk, hw_blk), lambda ci, hi: (0, ci, hi))],
        out_specs=pl.BlockSpec((N, c_blk), lambda ci, hi: (0, ci)),
        compiler_params=pltpu.CompilerParams(
            dimension_semantics=("parallel", "arbitrary"),
            vmem_limit_bytes=_VMEM_LIMIT),
        cost_estimate=pl.CostEstimate(
            flops=N * Cin * HW,
            transcendentals=0,
            bytes_accessed=N * Cin * HW * itemsize + N * Cin * 4),
    )(x3)

    # ---- Phase 2: matmul + folded-BN + ReLU, broadcast over spatial tiles ----
    out3 = pl.pallas_call(
        _broadcast_kernel,
        out_shape=jax.ShapeDtypeStruct((N, Cout, HW), x.dtype),
        grid=(n_hw,),
        in_specs=[
            pl.BlockSpec((N, Cin), lambda hi: (0, 0)),
            pl.BlockSpec((Cin, Cout), lambda hi: (0, 0)),
            pl.BlockSpec((1, Cout), lambda hi: (0, 0)),
        ],
        out_specs=pl.BlockSpec((N, Cout, hw_blk), lambda hi: (0, 0, hi)),
        compiler_params=pltpu.CompilerParams(
            dimension_semantics=("parallel",),
            vmem_limit_bytes=_VMEM_LIMIT),
        cost_estimate=pl.CostEstimate(
            flops=2 * N * Cin * Cout * n_hw,
            transcendentals=0,
            bytes_accessed=N * Cout * HW * itemsize + N * Cin * 4
                           + Cin * Cout * 4),
    )(pooled_sums, w_folded, bias)

    return out3.reshape(N, Cout, H, W)


def aspp_pooling_ref(x, conv_w, gamma, beta, running_mean, running_var):
    """Pure-JAX reference mirroring the PyTorch forward (eval mode)."""
    N, Cin, H, W = x.shape
    Cout = conv_w.shape[0]
    pooled = jnp.mean(x.astype(jnp.float32), axis=(2, 3))                 # (N, Cin)
    y = pooled @ conv_w.reshape(Cout, Cin).astype(jnp.float32).T          # (N, Cout)
    bn = (y - running_mean) / jnp.sqrt(running_var + BN_EPS) * gamma + beta
    act = jnp.maximum(bn, 0.0)
    return jnp.broadcast_to(act[:, :, None, None], (N, Cout, H, W)).astype(x.dtype)


if __name__ == "__main__":
    key = jax.random.PRNGKey(0)
    k_x, k_w, k_g, k_b, k_m, k_v = jax.random.split(key, 6)

    N, Cin, Cout, H, W = 2, 4, 8, 16, 16

    x = jax.random.normal(k_x, (N, Cin, H, W), dtype=jnp.float32)
    conv_w = jax.random.normal(k_w, (Cout, Cin, 1, 1), dtype=jnp.float32) * 0.1
    gamma = jax.random.uniform(k_g, (Cout,), minval=0.5, maxval=1.5)
    beta = jax.random.normal(k_b, (Cout,)) * 0.1
    running_mean = jax.random.normal(k_m, (Cout,)) * 0.1
    running_var = jax.random.uniform(k_v, (Cout,), minval=0.5, maxval=1.5)

    out = aspp_pooling(x, conv_w, gamma, beta, running_mean, running_var)
    out = jax.block_until_ready(out)

    ref = aspp_pooling_ref(x, conv_w, gamma, beta, running_mean, running_var)
    assert out.shape == (N, Cout, H, W)
    assert jnp.allclose(out, ref, atol=1e-5, rtol=1e-5), float(
        jnp.max(jnp.abs(out - ref)))

    print("KERNEL_OK")
</pallas_src>

<mosaic_0001>
module attributes {stable_mosaic.version = 11 : i64} {
  func.func @_pool_sum_kernel(%arg0: i32, %arg1: i32, %arg2: memref<2x4x256xf32, #tpu.memory_space<vmem>>, %arg3: memref<2x4xf32, #tpu.memory_space<vmem>>) attributes {dimension_semantics = [#tpu.dimension_semantics<parallel>, #tpu.dimension_semantics<arbitrary>], iteration_bounds = array<i64: 1, 1>, scalar_prefetch = 0 : i64, scratch_operands = 0 : i64, tpu.core_type = #tpu.core_type<tc>, window_params = [{transform_indices = @transform_0, window_bounds = array<i64: 2, 4, 256>}, {transform_indices = @transform_1, window_bounds = array<i64: 2, 4>}]} {
    %c0_i32 = arith.constant 0 : i32
    %0 = arith.cmpi eq, %arg1, %c0_i32 : i32
    %1 = arith.extui %0 : i1 to i32
    %c0_i32_0 = arith.constant 0 : i32
    %2 = arith.cmpi ne, %1, %c0_i32_0 : i32
    scf.if %2 {
      %cst_7 = arith.constant 0.000000e+00 : f32
      %8 = vector.broadcast %cst_7 : f32 to vector<2x4xf32>
      %c0_8 = arith.constant 0 : index
      %c0_9 = arith.constant 0 : index
      %9 = vector.load %arg3[%c0_8, %c0_9] : memref<2x4xf32, #tpu.memory_space<vmem>>, vector<2x4xf32>
      tpu.vector_store %arg3[%c0_8, %c0_9], %8 {strides = array<i32>} : memref<2x4xf32, #tpu.memory_space<vmem>>, vector<2x4xf32>,
    } else {
    }
    %c0 = arith.constant 0 : index
    %c0_1 = arith.constant 0 : index
    %c0_2 = arith.constant 0 : index
    %3 = vector.load %arg2[%c0, %c0_1, %c0_2] : memref<2x4x256xf32, #tpu.memory_space<vmem>>, vector<2x4x256xf32>
    %c0_3 = arith.constant 0 : index
    %c0_4 = arith.constant 0 : index
    %4 = vector.load %arg3[%c0_3, %c0_4] : memref<2x4xf32, #tpu.memory_space<vmem>>, vector<2x4xf32>
    %cst = arith.constant dense<0.000000e+00> : vector<2x4xf32>
    %5 = vector.multi_reduction <add>, %3, %cst [2] : vector<2x4x256xf32> to vector<2x4xf32>
    %6 = arith.addf %4, %5 : vector<2x4xf32>
    %c0_5 = arith.constant 0 : index
    %c0_6 = arith.constant 0 : index
    %7 = vector.load %arg3[%c0_5, %c0_6] : memref<2x4xf32, #tpu.memory_space<vmem>>, vector<2x4xf32>
    tpu.vector_store %arg3[%c0_5, %c0_6], %6 {strides = array<i32>} : memref<2x4xf32, #tpu.memory_space<vmem>>, vector<2x4xf32>,
    return
  }
  func.func @transform_0(%arg0: i32, %arg1: i32) -> (i32, i32, i32) {
    %c0_i32 = arith.constant 0 : i32
    %c0_i32_0 = arith.constant 0 : i32
    return %c0_i32, %arg0, %arg1 : i32, i32, i32
  }
  func.func @transform_1(%arg0: i32, %arg1: i32) -> (i32, i32) {
    %c0_i32 = arith.constant 0 : i32
    %c0_i32_0 = arith.constant 0 : i32
    return %c0_i32, %arg0 : i32, i32
  }
}

</mosaic_0001>

<llo_original>
// kernel: tpu_custom_call.1
$region0: #{tpu_custom_call.1}
  #allocation0 [shape = 'u32[]', space=smem, size = 0x4, offset = 0x4, fixed_abs, tag = 'smem constant byte address 0x4 - core index']
  #allocation1 [shape = 'u32[144,128]{1,0:T(1,128)}', space=vmem, size = 0x12000, scoped, tag = 'internal scratch']
  %s0 = inlined_call_operand.hbm [shape: f32[2,4,256], index: 0, kind: input, shape index: {}]
  %s1 = inlined_call_operand.hbm [shape: f32[2,4], index: 1, kind: output, shape index: {}]
  %s2 = sld [smem:[#allocation0]]
  $region22: #{tpu_custom_call.1} parent=0
    _
  %s4 = ssub.s32 1, %s2
  %s5 = scalar_select 0, %s4, %s2
  $region1: #{tpu_custom_call.1} parent=0
    #allocation2 [shape = 'u8[8192]{0}', space=vmem, size = 0x2000, scoped, tag = 'input window, operand 0, single buffered']
    #allocation3 [shape = 's32[1]{0}', space=sflag, size = 0x4, scoped, tag = 'scoped memory for tpu_custom_call.1']
    #allocation4 [shape = 's32[1]{0}', space=sflag, size = 0x4, scoped, tag = 'scoped memory for tpu_custom_call.1']
    #allocation5 [shape = 'u8[1024]{0}', space=vmem, size = 0x400, scoped, tag = 'output window, operand 0, single buffered']
    %6 = vsyncpa [#allocation3], 0
    %7 = vsyncpa [#allocation4], 0
    // Predicated region
    $region2: #{tpu_custom_call.1} parent=1 // pred_check
      _
    $region3: #{tpu_custom_call.1} parent=1 // pred_check_branch
      %9 = sbr.rel (0) target = $region5
    $region4: #{tpu_custom_call.1} parent=1 // pred_region
      %s11 = ssub.s32 256, 256
      %12 = vsyncadd [#allocation3], %s11
      %s13 = sshll.u32 [#allocation2], 4
      %s14 = int_to_ptr.vmem [resolvable:$true] %s13
      %19 = dma.hbm_to_vmem [thread:$0]  %s0, 256, %s14, [#allocation3], 128, 128, 8
    $region5: #{tpu_custom_call.1} parent=1 // pred_fallthru
      _
    // Predicated region
    $region6: #{tpu_custom_call.1} parent=1 // pred_check
      _
    $region7: #{tpu_custom_call.1} parent=1 // pred_check_branch
      %21 = sbr.rel (0) target = $region9
    $region8: #{tpu_custom_call.1} parent=1 // pred_region
      %22 = dma.done [#allocation3], 256
    $region9: #{tpu_custom_call.1} parent=1 // pred_fallthru
      _
    %p23 = scmp.eq.s32.totalorder 0, 0
    // Predicated region
    $region10: #{tpu_custom_call.1} parent=1 // pred_check
      %p24 = pneg %p23
    $region11: #{tpu_custom_call.1} parent=1 // pred_check_branch
      %26 = sbr.rel (%p24) target = $region13
    $region12: #{tpu_custom_call.1} parent=1 // pred_region
      %vm27 = vcmask 25600
      %28 = vst.msk [vmem:[#allocation5] sm:$0x3] %vm27, 0.0
    $region13: #{tpu_custom_call.1} parent=1 // pred_fallthru
      _
    %v29 = vld [vmem:[#allocation2] sm:$0xff]
    %v30 = vld [vmem:[#allocation2 + $0x8] sm:$0xff]
    %v31 = vld [vmem:[#allocation5] sm:$0x3]
    %v34 = vcombine.high %v29, %v29
    %v35 = vcombine.high %v30, %v30
    %vm38 = vcmask 1043456
    %v39 = vsel %vm38, %v29, 0.0
    %v40 = vsel %vm38, %v34, 0.0
    %v41 = vadd.f32 %v39, %v40
    %42 = vadd.xlane.f32.xlu0 %v41
    %v43 = vpop.xlane.xlu0 %42
    %v44 = vsel %vm38, %v30, 0.0
    %v45 = vsel %vm38, %v35, 0.0
    %v46 = vadd.f32 %v44, %v45
    %47 = vadd.xlane.f32.xlu0 %v46
    %v48 = vpop.xlane.xlu0 %47
    %v51 = vlaneseq
    %v52 = vand.u32 %v51, 127
    %v53 = vlaneseq
    %v54 = vshrl.u32 %v53, 7
    %v55 = vsub.s32 %v52, %v54
    %v56 = vrot.slane %v43, %v55
    %v57 = vlaneseq
    %v58 = vshrl.u32 %v57, 7
    %v59 = vsub.s32 %v52, %v58
    %v60 = vrot.slane %v48, %v59
    %vm61 = vcmask 1041409
    %v62 = vsel %vm61, %v60, %v56
    %v64 = vadd.f32 %v31, %v62
    %vm65 = vcmask 25600
    %66 = vst.msk [vmem:[#allocation5] sm:$0x3] %vm65, %v64
    // Predicated region
    $region14: #{tpu_custom_call.1} parent=1 // pred_check
      _
    $region15: #{tpu_custom_call.1} parent=1 // pred_check_branch
      %68 = sbr.rel (0) target = $region17
    $region16: #{tpu_custom_call.1} parent=1 // pred_region
      %s70 = ssub.s32 32, 32
      %71 = vsyncadd [#allocation4], %s70
      %s73 = sshll.u32 [#allocation5], 4
      %s74 = int_to_ptr.vmem [resolvable:$true] %s73
      %76 = dma.vmem_to_hbm [thread:$0]  %s74, 32, %s1, [#allocation4]
    $region17: #{tpu_custom_call.1} parent=1 // pred_fallthru
      _
    // Predicated region
    $region18: #{tpu_custom_call.1} parent=1 // pred_check
      _
    $region19: #{tpu_custom_call.1} parent=1 // pred_check_branch
      %78 = sbr.rel (0) target = $region21
    $region20: #{tpu_custom_call.1} parent=1 // pred_region
      %79 = dma.done [#allocation4], 32
    $region21: #{tpu_custom_call.1} parent=1 // pred_fallthru
      _
    %80 = vsyncpa [#allocation3], 1
    %81 = vsyncpa [#allocation4], 1

</llo_original>
